<compile_context>
chip_gen: v6e
topology: v6e:2x2x1
jax: 0.10.0
libtpu: 0.0.40
codegen_flags: <defaults>
</compile_context>

<pallas_src>
import jax
import jax.numpy as jnp
from jax.experimental import pallas as pl

EPS = 1e-5


def conv_bn_hsig_kernel(x_ref, w_ref, g_ref, b_ref, o_ref):
    # x_ref: (N, Cin, HWp)   f32 VMEM -- spatially zero-padded input, H/W flattened
    # w_ref: (Cout, Cin)     f32 VMEM -- 1x1 conv weights
    # g_ref: (Cout, 1)       f32 VMEM -- BN gamma
    # b_ref: (Cout, 1)       f32 VMEM -- BN beta
    # o_ref: (N, Cout, HWp)  f32 VMEM
    n, cin, hwp = x_ref.shape
    cout = o_ref.shape[1]
    inv_m = 1.0 / float(n * hwp)   # stats counted over all N*Hp*Wp conv outputs

    w = w_ref[...]                 # (Cout, Cin)

    # Pass 1: per-sample (Cout, HWp) conv slabs via Cin column-broadcast FMAs;
    # accumulate per-channel sum / sum-of-squares with lane-axis reductions.
    ys = []
    s1 = jnp.zeros((cout, 1), jnp.float32)
    s2 = jnp.zeros((cout, 1), jnp.float32)
    for i in range(n):
        y = w[:, 0:1] * x_ref[i, 0:1, :]                 # (Cout,1)*(1,HWp)->(Cout,HWp)
        for ci in range(1, cin):
            y = y + w[:, ci:ci + 1] * x_ref[i, ci:ci + 1, :]
        ys.append(y)
        s1 = s1 + jnp.sum(y, axis=-1, keepdims=True)     # (Cout,1)
        s2 = s2 + jnp.sum(y * y, axis=-1, keepdims=True)  # (Cout,1)

    # Training-mode BatchNorm2d statistics (biased variance, single pass).
    mu = s1 * inv_m
    var = jnp.maximum(s2 * inv_m - mu * mu, 0.0)
    scale = g_ref[...] * jax.lax.rsqrt(var + EPS)        # (Cout,1)
    # Fold BN affine + hard-sigmoid into one FMA + clip per sample.
    scale6 = scale * (1.0 / 6.0)
    shift6 = (b_ref[...] - mu * scale + 3.0) * (1.0 / 6.0)

    # Pass 2: normalize + hard-sigmoid, whole-slab stores (wide vst).
    for i in range(n):
        o_ref[i] = jnp.clip(ys[i] * scale6 + shift6, 0.0, 1.0)


def conv_bn_hardsigmoid(x_nchw, conv_w, conv_b, gamma, beta):
    """x_nchw: (N, Cin, H, W) f32; conv_w: (Cout, Cin, 1, 1); conv_b: (Cout,).
    Returns (N, Cout, H+2, W+2) f32 (conv padding=1 with a 1x1 kernel)."""
    n, cin, h, w = x_nchw.shape
    cout = conv_w.shape[0]
    hp, wp = h + 2, w + 2
    hwp = hp * wp

    # padding=1 with a 1x1 kernel == zero-pad the input spatially.  The reshape
    # to (N, Cin, Hp*Wp) is layout-preserving (free); no transposes anywhere.
    x = jnp.pad(x_nchw, ((0, 0), (0, 0), (1, 1), (1, 1))).reshape(n, cin, hwp)

    w_mat = conv_w.reshape(cout, cin)
    # conv bias is cancelled by training-mode BN mean subtraction (1x1 kernel);
    # intentionally not passed to the kernel.
    del conv_b

    g2 = gamma.reshape(cout, 1)
    b2 = beta.reshape(cout, 1)

    vmem_full = lambda shape: pl.BlockSpec(shape, lambda: (0,) * len(shape))

    out_flat = pl.pallas_call(
        conv_bn_hsig_kernel,
        out_shape=jax.ShapeDtypeStruct((n, cout, hwp), jnp.float32),
        grid=(),
        in_specs=[
            vmem_full((n, cin, hwp)),
            vmem_full((cout, cin)),
            vmem_full((cout, 1)),
            vmem_full((cout, 1)),
        ],
        out_specs=vmem_full((n, cout, hwp)),
    )(x, w_mat, g2, b2)

    # Free reshape back to NCHW padded spatial dims.
    return out_flat.reshape(n, cout, hp, wp)


def reference(x_nchw, conv_w, conv_b, gamma, beta):
    """Pure-JAX reference of the PyTorch forward (training-mode BN)."""
    n, cin, h, w = x_nchw.shape
    cout = conv_w.shape[0]
    xp = jnp.pad(x_nchw, ((0, 0), (0, 0), (1, 1), (1, 1)))
    wm = conv_w.reshape(cout, cin)
    y = jnp.einsum("oc,nchw->nohw", wm, xp) + conv_b[None, :, None, None]
    mean = jnp.mean(y, axis=(0, 2, 3), keepdims=True)
    var = jnp.mean((y - mean) ** 2, axis=(0, 2, 3), keepdims=True)
    z = (y - mean) * jax.lax.rsqrt(var + EPS)
    z = z * gamma[None, :, None, None] + beta[None, :, None, None]
    return jnp.clip(z + 3.0, 0.0, 6.0) / 6.0


if __name__ == "__main__":
    key = jax.random.PRNGKey(0)
    k_x, k_w, k_b = jax.random.split(key, 3)

    # Small shapes consistent with the module: N=2, Cin=3 -> Cout=8, H=W=16.
    N, CIN, H, W = 2, 3, 16, 16
    COUT = 8

    x = jax.random.normal(k_x, (N, CIN, H, W), dtype=jnp.float32)
    conv_w = jax.random.normal(k_w, (COUT, CIN, 1, 1), dtype=jnp.float32) * 0.1
    conv_b = jax.random.normal(k_b, (COUT,), dtype=jnp.float32) * 0.1
    gamma = jnp.ones((COUT,), dtype=jnp.float32)   # BatchNorm2d weight default
    beta = jnp.zeros((COUT,), dtype=jnp.float32)   # BatchNorm2d bias default

    out = conv_bn_hardsigmoid(x, conv_w, conv_b, gamma, beta)
    jax.block_until_ready(out)
    assert out.shape == (N, COUT, H + 2, W + 2), out.shape

    ref = reference(x, conv_w, conv_b, gamma, beta)
    max_err = float(jnp.max(jnp.abs(out - ref)))
    # single-pass variance in the kernel vs two-pass in the reference: allow a
    # small extra numeric margin (well inside it at these magnitudes).
    assert max_err < 2e-5, f"max abs err {max_err}"

    print("KERNEL_OK")
</pallas_src>

<mosaic_0001>
module attributes {stable_mosaic.version = 11 : i64} {
  func.func @conv_bn_hsig_kernel(%arg0: memref<2x3x324xf32, #tpu.memory_space<vmem>>, %arg1: memref<8x3xf32, #tpu.memory_space<vmem>>, %arg2: memref<8x1xf32, #tpu.memory_space<vmem>>, %arg3: memref<8x1xf32, #tpu.memory_space<vmem>>, %arg4: memref<2x8x324xf32, #tpu.memory_space<vmem>>) attributes {dimension_semantics = [], scalar_prefetch = 0 : i64, scratch_operands = 0 : i64, tpu.core_type = #tpu.core_type<tc>} {
    %c0 = arith.constant 0 : index
    %c0_0 = arith.constant 0 : index
    %0 = vector.load %arg1[%c0, %c0_0] : memref<8x3xf32, #tpu.memory_space<vmem>>, vector<8x3xf32>
    %cst = arith.constant 0.000000e+00 : f32
    %1 = vector.broadcast %cst : f32 to vector<8x1xf32>
    %cst_1 = arith.constant 0.000000e+00 : f32
    %2 = vector.broadcast %cst_1 : f32 to vector<8x1xf32>
    %3 = vector.extract_strided_slice %0 {offsets = [0, 0], sizes = [8, 1], strides = [1, 1]} : vector<8x3xf32> to vector<8x1xf32>
    %c0_2 = arith.constant 0 : index
    %c0_3 = arith.constant 0 : index
    %c0_4 = arith.constant 0 : index
    %4 = vector.load %arg0[%c0_2, %c0_3, %c0_4] : memref<2x3x324xf32, #tpu.memory_space<vmem>>, vector<1x1x324xf32>
    %5 = vector.shape_cast %4 : vector<1x1x324xf32> to vector<1x324xf32>
    %6 = vector.broadcast %3 : vector<8x1xf32> to vector<8x324xf32>
    %7 = vector.broadcast %5 : vector<1x324xf32> to vector<8x324xf32>
    %8 = arith.mulf %6, %7 : vector<8x324xf32>
    %9 = vector.extract_strided_slice %0 {offsets = [0, 1], sizes = [8, 1], strides = [1, 1]} : vector<8x3xf32> to vector<8x1xf32>
    %c0_5 = arith.constant 0 : index
    %c1 = arith.constant 1 : index
    %c0_6 = arith.constant 0 : index
    %10 = vector.load %arg0[%c0_5, %c1, %c0_6] : memref<2x3x324xf32, #tpu.memory_space<vmem>>, vector<1x1x324xf32>
    %11 = vector.shape_cast %10 : vector<1x1x324xf32> to vector<1x324xf32>
    %12 = vector.broadcast %9 : vector<8x1xf32> to vector<8x324xf32>
    %13 = vector.broadcast %11 : vector<1x324xf32> to vector<8x324xf32>
    %14 = arith.mulf %12, %13 : vector<8x324xf32>
    %15 = arith.addf %8, %14 : vector<8x324xf32>
    %16 = vector.extract_strided_slice %0 {offsets = [0, 2], sizes = [8, 1], strides = [1, 1]} : vector<8x3xf32> to vector<8x1xf32>
    %c0_7 = arith.constant 0 : index
    %c2 = arith.constant 2 : index
    %c0_8 = arith.constant 0 : index
    %17 = vector.load %arg0[%c0_7, %c2, %c0_8] : memref<2x3x324xf32, #tpu.memory_space<vmem>>, vector<1x1x324xf32>
    %18 = vector.shape_cast %17 : vector<1x1x324xf32> to vector<1x324xf32>
    %19 = vector.broadcast %16 : vector<8x1xf32> to vector<8x324xf32>
    %20 = vector.broadcast %18 : vector<1x324xf32> to vector<8x324xf32>
    %21 = arith.mulf %19, %20 : vector<8x324xf32>
    %22 = arith.addf %15, %21 : vector<8x324xf32>
    %cst_9 = arith.constant dense<0.000000e+00> : vector<8xf32>
    %23 = vector.multi_reduction <add>, %22, %cst_9 [1] : vector<8x324xf32> to vector<8xf32>
    %24 = vector.shape_cast %23 : vector<8xf32> to vector<8x1xf32>
    %25 = arith.addf %1, %24 : vector<8x1xf32>
    %26 = arith.mulf %22, %22 : vector<8x324xf32>
    %cst_10 = arith.constant dense<0.000000e+00> : vector<8xf32>
    %27 = vector.multi_reduction <add>, %26, %cst_10 [1] : vector<8x324xf32> to vector<8xf32>
    %28 = vector.shape_cast %27 : vector<8xf32> to vector<8x1xf32>
    %29 = arith.addf %2, %28 : vector<8x1xf32>
    %30 = vector.extract_strided_slice %0 {offsets = [0, 0], sizes = [8, 1], strides = [1, 1]} : vector<8x3xf32> to vector<8x1xf32>
    %c1_11 = arith.constant 1 : index
    %c0_12 = arith.constant 0 : index
    %c0_13 = arith.constant 0 : index
    %31 = vector.load %arg0[%c1_11, %c0_12, %c0_13] : memref<2x3x324xf32, #tpu.memory_space<vmem>>, vector<1x1x324xf32>
    %32 = vector.shape_cast %31 : vector<1x1x324xf32> to vector<1x324xf32>
    %33 = vector.broadcast %30 : vector<8x1xf32> to vector<8x324xf32>
    %34 = vector.broadcast %32 : vector<1x324xf32> to vector<8x324xf32>
    %35 = arith.mulf %33, %34 : vector<8x324xf32>
    %36 = vector.extract_strided_slice %0 {offsets = [0, 1], sizes = [8, 1], strides = [1, 1]} : vector<8x3xf32> to vector<8x1xf32>
    %c1_14 = arith.constant 1 : index
    %c1_15 = arith.constant 1 : index
    %c0_16 = arith.constant 0 : index
    %37 = vector.load %arg0[%c1_14, %c1_15, %c0_16] : memref<2x3x324xf32, #tpu.memory_space<vmem>>, vector<1x1x324xf32>
    %38 = vector.shape_cast %37 : vector<1x1x324xf32> to vector<1x324xf32>
    %39 = vector.broadcast %36 : vector<8x1xf32> to vector<8x324xf32>
    %40 = vector.broadcast %38 : vector<1x324xf32> to vector<8x324xf32>
    %41 = arith.mulf %39, %40 : vector<8x324xf32>
    %42 = arith.addf %35, %41 : vector<8x324xf32>
    %43 = vector.extract_strided_slice %0 {offsets = [0, 2], sizes = [8, 1], strides = [1, 1]} : vector<8x3xf32> to vector<8x1xf32>
    %c1_17 = arith.constant 1 : index
    %c2_18 = arith.constant 2 : index
    %c0_19 = arith.constant 0 : index
    %44 = vector.load %arg0[%c1_17, %c2_18, %c0_19] : memref<2x3x324xf32, #tpu.memory_space<vmem>>, vector<1x1x324xf32>
    %45 = vector.shape_cast %44 : vector<1x1x324xf32> to vector<1x324xf32>
    %46 = vector.broadcast %43 : vector<8x1xf32> to vector<8x324xf32>
    %47 = vector.broadcast %45 : vector<1x324xf32> to vector<8x324xf32>
    %48 = arith.mulf %46, %47 : vector<8x324xf32>
    %49 = arith.addf %42, %48 : vector<8x324xf32>
    %cst_20 = arith.constant dense<0.000000e+00> : vector<8xf32>
    %50 = vector.multi_reduction <add>, %49, %cst_20 [1] : vector<8x324xf32> to vector<8xf32>
    %51 = vector.shape_cast %50 : vector<8xf32> to vector<8x1xf32>
    %52 = arith.addf %25, %51 : vector<8x1xf32>
    %53 = arith.mulf %49, %49 : vector<8x324xf32>
    %cst_21 = arith.constant dense<0.000000e+00> : vector<8xf32>
    %54 = vector.multi_reduction <add>, %53, %cst_21 [1] : vector<8x324xf32> to vector<8xf32>
    %55 = vector.shape_cast %54 : vector<8xf32> to vector<8x1xf32>
    %56 = arith.addf %29, %55 : vector<8x1xf32>
    %cst_22 = arith.constant 0.00154320989 : f32
    %57 = vector.broadcast %cst_22 : f32 to vector<8x1xf32>
    %58 = arith.mulf %52, %57 : vector<8x1xf32>
    %cst_23 = arith.constant 0.00154320989 : f32
    %59 = vector.broadcast %cst_23 : f32 to vector<8x1xf32>
    %60 = arith.mulf %56, %59 : vector<8x1xf32>
    %61 = arith.mulf %58, %58 : vector<8x1xf32>
    %62 = arith.subf %60, %61 : vector<8x1xf32>
    %cst_24 = arith.constant 0.000000e+00 : f32
    %63 = vector.broadcast %cst_24 : f32 to vector<8x1xf32>
    %64 = arith.maximumf %62, %63 : vector<8x1xf32>
    %c0_25 = arith.constant 0 : index
    %c0_26 = arith.constant 0 : index
    %65 = vector.load %arg2[%c0_25, %c0_26] : memref<8x1xf32, #tpu.memory_space<vmem>>, vector<8x1xf32>
    %cst_27 = arith.constant 9.99999974E-6 : f32
    %66 = vector.broadcast %cst_27 : f32 to vector<8x1xf32>
    %67 = arith.addf %64, %66 : vector<8x1xf32>
    %68 = math.rsqrt %67 : vector<8x1xf32>
    %69 = arith.mulf %65, %68 : vector<8x1xf32>
    %cst_28 = arith.constant 0.166666672 : f32
    %70 = vector.broadcast %cst_28 : f32 to vector<8x1xf32>
    %71 = arith.mulf %69, %70 : vector<8x1xf32>
    %c0_29 = arith.constant 0 : index
    %c0_30 = arith.constant 0 : index
    %72 = vector.load %arg3[%c0_29, %c0_30] : memref<8x1xf32, #tpu.memory_space<vmem>>, vector<8x1xf32>
    %73 = arith.mulf %58, %69 : vector<8x1xf32>
    %74 = arith.subf %72, %73 : vector<8x1xf32>
    %cst_31 = arith.constant 3.000000e+00 : f32
    %75 = vector.broadcast %cst_31 : f32 to vector<8x1xf32>
    %76 = arith.addf %74, %75 : vector<8x1xf32>
    %cst_32 = arith.constant 0.166666672 : f32
    %77 = vector.broadcast %cst_32 : f32 to vector<8x1xf32>
    %78 = arith.mulf %76, %77 : vector<8x1xf32>
    %79 = vector.broadcast %71 : vector<8x1xf32> to vector<8x324xf32>
    %80 = arith.mulf %22, %79 : vector<8x324xf32>
    %81 = vector.broadcast %78 : vector<8x1xf32> to vector<8x324xf32>
    %82 = arith.addf %80, %81 : vector<8x324xf32>
    %cst_33 = arith.constant 0.000000e+00 : f32
    %cst_34 = arith.constant 1.000000e+00 : f32
    %83 = vector.broadcast %cst_33 : f32 to vector<8x324xf32>
    %84 = arith.maximumf %83, %82 : vector<8x324xf32>
    %85 = vector.broadcast %cst_34 : f32 to vector<8x324xf32>
    %86 = arith.minimumf %85, %84 : vector<8x324xf32>
    %c0_35 = arith.constant 0 : index
    %c0_36 = arith.constant 0 : index
    %c0_37 = arith.constant 0 : index
    %87 = vector.load %arg4[%c0_35, %c0_36, %c0_37] : memref<2x8x324xf32, #tpu.memory_space<vmem>>, vector<1x8x324xf32>
    %88 = vector.shape_cast %87 : vector<1x8x324xf32> to vector<8x324xf32>
    %89 = vector.shape_cast %86 : vector<8x324xf32> to vector<1x8x324xf32>
    tpu.vector_store %arg4[%c0_35, %c0_36, %c0_37], %89 {strides = array<i32>} : memref<2x8x324xf32, #tpu.memory_space<vmem>>, vector<1x8x324xf32>,
    %90 = vector.broadcast %71 : vector<8x1xf32> to vector<8x324xf32>
    %91 = arith.mulf %49, %90 : vector<8x324xf32>
    %92 = vector.broadcast %78 : vector<8x1xf32> to vector<8x324xf32>
    %93 = arith.addf %91, %92 : vector<8x324xf32>
    %cst_38 = arith.constant 0.000000e+00 : f32
    %cst_39 = arith.constant 1.000000e+00 : f32
    %94 = vector.broadcast %cst_38 : f32 to vector<8x324xf32>
    %95 = arith.maximumf %94, %93 : vector<8x324xf32>
    %96 = vector.broadcast %cst_39 : f32 to vector<8x324xf32>
    %97 = arith.minimumf %96, %95 : vector<8x324xf32>
    %c1_40 = arith.constant 1 : index
    %c0_41 = arith.constant 0 : index
    %c0_42 = arith.constant 0 : index
    %98 = vector.load %arg4[%c1_40, %c0_41, %c0_42] : memref<2x8x324xf32, #tpu.memory_space<vmem>>, vector<1x8x324xf32>
    %99 = vector.shape_cast %98 : vector<1x8x324xf32> to vector<8x324xf32>
    %100 = vector.shape_cast %97 : vector<8x324xf32> to vector<1x8x324xf32>
    tpu.vector_store %arg4[%c1_40, %c0_41, %c0_42], %100 {strides = array<i32>} : memref<2x8x324xf32, #tpu.memory_space<vmem>>, vector<1x8x324xf32>,
    return
  }
}

</mosaic_0001>

<llo_original>
// kernel: tpu_custom_call.1
$region0: #{tpu_custom_call.1}
  #allocation0 [shape = 'u32[]', space=smem, size = 0x4, offset = 0x4, fixed_abs, tag = 'smem constant byte address 0x4 - core index']
  #allocation1 [shape = 'u32[144,128]{1,0:T(1,128)}', space=vmem, size = 0x12000, scoped, tag = 'internal scratch']
  %s0 = inlined_call_operand.vmem [shape: f32[2,3,324], index: 0, kind: input, shape index: {}]
  %s1 = inlined_call_operand.vmem [shape: f32[8,3], index: 1, kind: input, shape index: {}]
  %s2 = inlined_call_operand.vmem [shape: f32[8,1], index: 2, kind: input, shape index: {}]
  %s3 = inlined_call_operand.vmem [shape: f32[8,1], index: 3, kind: input, shape index: {}]
  %s4 = inlined_call_operand.hbm [shape: f32[2,8,324], index: 4, kind: output, shape index: {}]
  %s5 = sld [smem:[#allocation0]]
  $region26: #{tpu_custom_call.1} parent=0
    _
  %s7 = ssub.s32 1, %s5
  %s8 = scalar_select 0, %s7, %s5
  $region1: #{tpu_custom_call.1} parent=0
    #allocation2 [shape = 'u8[24576]{0}', space=vmem, size = 0x6000, scoped, tag = 'output window, operand 0, single buffered']
    #allocation3 [shape = 's32[1]{0}', space=sflag, size = 0x4, scoped, tag = 'scoped memory for tpu_custom_call.1']
    %9 = vsyncpa [#allocation3], 0
    // Predicated region
    $region2: #{tpu_custom_call.1} parent=1 // pred_check
      _
    $region3: #{tpu_custom_call.1} parent=1 // pred_check_branch
      %11 = sbr.rel (0) target = $region5
    $region4: #{tpu_custom_call.1} parent=1 // pred_region
      _
    $region5: #{tpu_custom_call.1} parent=1 // pred_fallthru
      _
    // Predicated region
    $region6: #{tpu_custom_call.1} parent=1 // pred_check
      _
    $region7: #{tpu_custom_call.1} parent=1 // pred_check_branch
      %13 = sbr.rel (0) target = $region9
    $region8: #{tpu_custom_call.1} parent=1 // pred_region
      _
    $region9: #{tpu_custom_call.1} parent=1 // pred_fallthru
      _
    // Predicated region
    $region10: #{tpu_custom_call.1} parent=1 // pred_check
      _
    $region11: #{tpu_custom_call.1} parent=1 // pred_check_branch
      %15 = sbr.rel (0) target = $region13
    $region12: #{tpu_custom_call.1} parent=1 // pred_region
      _
    $region13: #{tpu_custom_call.1} parent=1 // pred_fallthru
      _
    // Predicated region
    $region14: #{tpu_custom_call.1} parent=1 // pred_check
      _
    $region15: #{tpu_custom_call.1} parent=1 // pred_check_branch
      %17 = sbr.rel (0) target = $region17
    $region16: #{tpu_custom_call.1} parent=1 // pred_region
      _
    $region17: #{tpu_custom_call.1} parent=1 // pred_fallthru
      _
    %v18 = vld [vmem:[%s1] sm:$0xff]
    %v19 = vld [vmem:[%s0] ss:$4 sm:$0x7]
    %21 = vset.pattern.permute.xlu0 0
    %22 = vperm.xlu0 %21, %v18
    %v23 = vpop.permute.xlu0 %22
    %v26 = vlaneseq
    %v27 = vshrl.u32 %v26, 7
    %v28 = vsub.s32 0, %v27
    %v29 = vrot.slane %v19, %v28
    %v30 = vlaneseq
    %v31 = vshrl.u32 %v30, 7
    %v32 = vsub.s32 1, %v31
    %v33 = vrot.slane %v19, %v32
    %v34 = vlaneseq
    %v35 = vshrl.u32 %v34, 7
    %v36 = vsub.s32 2, %v35
    %v37 = vrot.slane %v19, %v36
    %v41 = vmul.f32 %v23, %v29
    %v42 = vmul.f32 %v23, %v33
    %v43 = vmul.f32 %v23, %v37
    %s44 = scalar_lea.vmem %s0, 1
    %v45 = vld [vmem:[%s44] ss:$4 sm:$0x7]
    %46 = vset.pattern.permute.xlu0 1
    %47 = vperm.xlu0 %46, %v18
    %v48 = vpop.permute.xlu0 %47
    %v51 = vlaneseq
    %v52 = vshrl.u32 %v51, 7
    %v53 = vsub.s32 0, %v52
    %v54 = vrot.slane %v45, %v53
    %v55 = vlaneseq
    %v56 = vshrl.u32 %v55, 7
    %v57 = vsub.s32 1, %v56
    %v58 = vrot.slane %v45, %v57
    %v59 = vlaneseq
    %v60 = vshrl.u32 %v59, 7
    %v61 = vsub.s32 2, %v60
    %v62 = vrot.slane %v45, %v61
    %v66 = vmul.f32 %v48, %v54
    %v67 = vmul.f32 %v48, %v58
    %v68 = vmul.f32 %v48, %v62
    %v69 = vadd.f32 %v41, %v66
    %v70 = vadd.f32 %v42, %v67
    %v71 = vadd.f32 %v43, %v68
    %s72 = scalar_lea.vmem %s0, 2
    %v73 = vld [vmem:[%s72] ss:$4 sm:$0x7]
    %74 = vset.pattern.permute.xlu0 2
    %75 = vperm.xlu0 %74, %v18
    %v76 = vpop.permute.xlu0 %75
    %v79 = vlaneseq
    %v80 = vshrl.u32 %v79, 7
    %v81 = vsub.s32 0, %v80
    %v82 = vrot.slane %v73, %v81
    %v83 = vlaneseq
    %v84 = vshrl.u32 %v83, 7
    %v85 = vsub.s32 1, %v84
    %v86 = vrot.slane %v73, %v85
    %v87 = vlaneseq
    %v88 = vshrl.u32 %v87, 7
    %v89 = vsub.s32 2, %v88
    %v90 = vrot.slane %v73, %v89
    %v94 = vmul.f32 %v76, %v82
    %v95 = vmul.f32 %v76, %v86
    %v96 = vmul.f32 %v76, %v90
    %v97 = vadd.f32 %v69, %v94
    %v98 = vadd.f32 %v70, %v95
    %v99 = vadd.f32 %v71, %v96
    %v100 = vadd.f32 %v97, %v98
    %vm101 = vcmask 556032
    %v102 = vsel %vm101, %v99, 0.0
    %v103 = vadd.f32 %v100, %v102
    %104 = vadd.xlane.f32.xlu0 %v103
    %v105 = vpop.xlane.xlu0 %104
    %v106 = vadd.f32 %v105, 0.0
    %v107 = vmul.f32 %v97, %v97
    %v108 = vmul.f32 %v98, %v98
    %v109 = vmul.f32 %v99, %v99
    %v110 = vadd.f32 %v107, %v108
    %v111 = vsel %vm101, %v109, 0.0
    %v112 = vadd.f32 %v110, %v111
    %113 = vadd.xlane.f32.xlu0 %v112
    %v114 = vpop.xlane.xlu0 %113
    %v115 = vadd.f32 %v114, 0.0
    %s116 = scalar_lea.vmem %s0, 12
    %v117 = vld [vmem:[%s116] ss:$4 sm:$0x7]
    %v119 = vlaneseq
    %v120 = vshrl.u32 %v119, 7
    %v121 = vsub.s32 0, %v120
    %v122 = vrot.slane %v117, %v121
    %v123 = vlaneseq
    %v124 = vshrl.u32 %v123, 7
    %v125 = vsub.s32 1, %v124
    %v126 = vrot.slane %v117, %v125
    %v127 = vlaneseq
    %v128 = vshrl.u32 %v127, 7
    %v129 = vsub.s32 2, %v128
    %v130 = vrot.slane %v117, %v129
    %v134 = vmul.f32 %v23, %v122
    %v135 = vmul.f32 %v23, %v126
    %v136 = vmul.f32 %v23, %v130
    %s137 = scalar_lea.vmem %s116, 1
    %v138 = vld [vmem:[%s137] ss:$4 sm:$0x7]
    %v140 = vlaneseq
    %v141 = vshrl.u32 %v140, 7
    %v142 = vsub.s32 0, %v141
    %v143 = vrot.slane %v138, %v142
    %v144 = vlaneseq
    %v145 = vshrl.u32 %v144, 7
    %v146 = vsub.s32 1, %v145
    %v147 = vrot.slane %v138, %v146
    %v148 = vlaneseq
    %v149 = vshrl.u32 %v148, 7
    %v150 = vsub.s32 2, %v149
    %v151 = vrot.slane %v138, %v150
    %v155 = vmul.f32 %v48, %v143
    %v156 = vmul.f32 %v48, %v147
    %v157 = vmul.f32 %v48, %v151
    %v158 = vadd.f32 %v134, %v155
    %v159 = vadd.f32 %v135, %v156
    %v160 = vadd.f32 %v136, %v157
    %s161 = scalar_lea.vmem %s116, 2
    %v162 = vld [vmem:[%s161] ss:$4 sm:$0x7]
    %v164 = vlaneseq
    %v165 = vshrl.u32 %v164, 7
    %v166 = vsub.s32 0, %v165
    %v167 = vrot.slane %v162, %v166
    %v168 = vlaneseq
    %v169 = vshrl.u32 %v168, 7
    %v170 = vsub.s32 1, %v169
    %v171 = vrot.slane %v162, %v170
    %v172 = vlaneseq
    %v173 = vshrl.u32 %v172, 7
    %v174 = vsub.s32 2, %v173
    %v175 = vrot.slane %v162, %v174
    %v179 = vmul.f32 %v76, %v167
    %v180 = vmul.f32 %v76, %v171
    %v181 = vmul.f32 %v76, %v175
    %v182 = vadd.f32 %v158, %v179
    %v183 = vadd.f32 %v159, %v180
    %v184 = vadd.f32 %v160, %v181
    %v185 = vadd.f32 %v182, %v183
    %v186 = vsel %vm101, %v184, 0.0
    %v187 = vadd.f32 %v185, %v186
    %188 = vadd.xlane.f32.xlu0 %v187
    %v189 = vpop.xlane.xlu0 %188
    %v190 = vadd.f32 %v106, %v189
    %v191 = vmul.f32 %v182, %v182
    %v192 = vmul.f32 %v183, %v183
    %v193 = vmul.f32 %v184, %v184
    %v194 = vadd.f32 %v191, %v192
    %v195 = vsel %vm101, %v193, 0.0
    %v196 = vadd.f32 %v194, %v195
    %197 = vadd.xlane.f32.xlu0 %v196
    %v198 = vpop.xlane.xlu0 %197
    %v199 = vadd.f32 %v115, %v198
    %v200 = vmul.f32 %v190, 0.0015432099
    %v201 = vmul.f32 %v199, 0.0015432099
    %v202 = vmul.f32 %v200, %v200
    %v203 = vsub.f32 %v201, %v202
    %v204 = vmax.f32 %v203, 0.0
    %v205 = vld [vmem:[%s2] sm:$0xff]
    %v206 = vadd.f32 %v204, 1e-05
    %v207 = vrsqrt.pop %v206
    %v208 = vmul.f32 %v205, %v207
    %v209 = vmul.f32 %v208, 0.16666667
    %v210 = vld [vmem:[%s3] sm:$0xff]
    %v211 = vmul.f32 %v200, %v208
    %v212 = vsub.f32 %v210, %v211
    %v213 = vadd.f32 %v212, 3.0
    %v214 = vmul.f32 %v213, 0.16666667
    %216 = vset.pattern.permute.xlu0 0
    %217 = vperm.xlu0 %216, %v209
    %v218 = vpop.permute.xlu0 %217
    %v220 = vmul.f32 %v97, %v218
    %v221 = vmul.f32 %v98, %v218
    %v222 = vmul.f32 %v99, %v218
    %224 = vset.pattern.permute.xlu0 0
    %225 = vperm.xlu0 %224, %v214
    %v226 = vpop.permute.xlu0 %225
    %v228 = vadd.f32 %v220, %v226
    %v229 = vadd.f32 %v221, %v226
    %v230 = vadd.f32 %v222, %v226
    %v231 = vmax.f32 %v228, 0.0
    %v232 = vmax.f32 %v229, 0.0
    %v233 = vmax.f32 %v230, 0.0
    %v234 = vmin.f32 %v231, 1.0
    %v235 = vmin.f32 %v232, 1.0
    %v236 = vmin.f32 %v233, 1.0
    %237 = vst [vmem:[#allocation2] sm:$0xff] %v234
    %238 = vst [vmem:[#allocation2 + $0x8] sm:$0xff] %v235
    %239 = vst.msk [vmem:[#allocation2 + $0x10] sm:$0xff] %vm101, %v236
    %v240 = vmul.f32 %v182, %v218
    %v241 = vmul.f32 %v183, %v218
    %v242 = vmul.f32 %v184, %v218
    %v243 = vadd.f32 %v240, %v226
    %v244 = vadd.f32 %v241, %v226
    %v245 = vadd.f32 %v242, %v226
    %v246 = vmax.f32 %v243, 0.0
    %v247 = vmax.f32 %v244, 0.0
    %v248 = vmax.f32 %v245, 0.0
    %v249 = vmin.f32 %v246, 1.0
    %v250 = vmin.f32 %v247, 1.0
    %v251 = vmin.f32 %v248, 1.0
    %s252 = scalar_lea.vmem [#allocation2], 24
    %253 = vst [vmem:[%s252] sm:$0xff] %v249
    %254 = vst [vmem:[%s252 + $0x8] sm:$0xff] %v250
    %255 = vst.msk [vmem:[%s252 + $0x10] sm:$0xff] %vm101, %v251
    // Predicated region
    $region18: #{tpu_custom_call.1} parent=1 // pred_check
      _
    $region19: #{tpu_custom_call.1} parent=1 // pred_check_branch
      %257 = sbr.rel (0) target = $region21
    $region20: #{tpu_custom_call.1} parent=1 // pred_region
      %s259 = ssub.s32 768, 768
      %260 = vsyncadd [#allocation3], %s259
      %s261 = sshll.u32 [#allocation2], 4
      %s262 = int_to_ptr.vmem [resolvable:$true] %s261
      %267 = dma.vmem_to_hbm [thread:$0]  %s262, 768, %s4, [#allocation3], 384, 384, 24
    $region21: #{tpu_custom_call.1} parent=1 // pred_fallthru
      _
    // Predicated region
    $region22: #{tpu_custom_call.1} parent=1 // pred_check
      _
    $region23: #{tpu_custom_call.1} parent=1 // pred_check_branch
      %269 = sbr.rel (0) target = $region25
    $region24: #{tpu_custom_call.1} parent=1 // pred_region
      %270 = dma.done [#allocation3], 768
    $region25: #{tpu_custom_call.1} parent=1 // pred_fallthru
      _
    %271 = vsyncpa [#allocation3], 1

</llo_original>
